<compile_context>
chip_gen: v5e
topology: v5e:2x2
jax: 0.10.0
libtpu: 0.0.40
codegen_flags: <defaults>
</compile_context>

<pallas_src>
import math

import jax
import jax.numpy as jnp
from jax import lax
from jax.experimental import pallas as pl
from jax.experimental.pallas import tpu as pltpu


def _linear_average_kernel(lhs_ref, mem_ref, out_tf_ref, out_f_ref):
    """One grid step: score one (TN, D) slab of the memory bank.

    lhs_ref    : VMEM (2B, D)   -> [features / T ; transformed_features / T^2] (resident)
    mem_ref    : VMEM (TN, D)   -> streamed memory-bank tile
    out_tf_ref : VMEM (B, TN)   -> out_trans_features tile
    out_f_ref  : VMEM (B, TN)   -> out_features tile
    """
    b = out_f_ref.shape[0]

    # A @ B^T with no materialized transpose: contract last dim of both.
    scores = lax.dot_general(
        lhs_ref[...], mem_ref[...],
        dimension_numbers=(((1,), (1,)), ((), ())),
        preferred_element_type=jnp.float32)          # (2B, TN)

    out_f_ref[...] = scores[:b].astype(out_f_ref.dtype)
    out_tf_ref[...] = scores[b:].astype(out_tf_ref.dtype)


def _pick_tile_n(n, d, b, vmem_budget_bytes=16 * 1024 * 1024):
    """Largest 128-aligned N-tile dividing the bank that fits the VMEM budget."""
    for tn in (8192, 4096, 2048, 1024, 512, 256, 128):
        if n < tn or n % tn != 0:
            continue
        # double-buffered bank tile + 2 double-buffered (B, TN) output tiles
        tile_bytes = 2 * tn * d * 4 + 2 * 2 * b * tn * 4
        if tile_bytes <= vmem_budget_bytes:
            return tn
    return n  # small / odd bank: single block (full-extent dims are allowed)


def linear_average_forward(features, transformed_features, indices, memory, params):
    """Pallas implementation of LinearAverageOp.forward.

    Args:
      features:              (B, D) float32
      transformed_features:  (B, D) float32
      indices:               (B,) int32 -- unused in forward (API parity only)
      memory:                (N, D) float32 memory bank
      params:                (2,) float32 [T, momentum]
    Returns:
      (out_trans_features, out_features, out_similarity)
    """
    del indices  # not used in the forward compute
    B, D = features.shape
    N, D2 = memory.shape
    assert D == D2, "feature dim mismatch"

    # Fused LHS, built once: rows [0, B) -> out_features / T,
    # rows [B, 2B) -> out_trans_features / T / T.
    inv_t = (1.0 / params[0]).astype(jnp.float32)
    lhs = jnp.concatenate(
        [features.astype(jnp.float32) * inv_t,
         transformed_features.astype(jnp.float32) * (inv_t * inv_t)],
        axis=0)                                       # (2B, D)

    tn = _pick_tile_n(N, D, B)
    grid = (pl.cdiv(N, tn),)

    out_tf, out_f = pl.pallas_call(
        _linear_average_kernel,
        out_shape=(
            jax.ShapeDtypeStruct((B, N), jnp.float32),   # out_trans_features
            jax.ShapeDtypeStruct((B, N), jnp.float32),   # out_features
        ),
        grid=grid,
        in_specs=[
            pl.BlockSpec((2 * B, D), lambda j: (0, 0)),  # fused LHS (resident)
            pl.BlockSpec((tn, D), lambda j: (j, 0)),     # memory tile (streamed)
        ],
        out_specs=(
            pl.BlockSpec((B, tn), lambda j: (0, j)),     # out_trans_features tile
            pl.BlockSpec((B, tn), lambda j: (0, j)),     # out_features tile
        ),
        compiler_params=pltpu.CompilerParams(
            dimension_semantics=("parallel",),           # shard N across cores (v7x)
            vmem_limit_bytes=32 * 1024 * 1024,           # above v5e's 16 MiB default
        ),
    )(lhs, memory)

    # Trivial (B, D) row reduction; done here so the kernel's N-axis stays
    # purely parallel and no lane-sparse (B, 1) block is re-stored per tile.
    out_sim = jnp.sum(features * transformed_features, axis=-1, keepdims=True)
    return out_tf, out_f, out_sim


def _reference_forward(features, transformed_features, memory, params):
    T = params[0]
    out_f = jnp.dot(features, memory.T, precision=lax.Precision.HIGHEST) / T
    out_tf = jnp.dot(transformed_features, memory.T,
                     precision=lax.Precision.HIGHEST) / T / T
    out_sim = jnp.sum(features * transformed_features, axis=-1, keepdims=True)
    return out_tf, out_f, out_sim


if __name__ == "__main__":
    # Module config (deterministic, small but large enough to exercise the grid).
    input_size = 32        # inputSize (feature dim D)
    output_size = 2048     # outputSize (memory bank entries, nLem) -> multiple grid steps
    batch = 8
    T = 0.07
    momentum = 0.5

    key = jax.random.PRNGKey(0)
    k_f, k_tf, k_mem, k_idx = jax.random.split(key, 4)

    # __init__: memory ~ Uniform(-stdv, stdv), stdv = 1/sqrt(inputSize/3)
    stdv = 1.0 / math.sqrt(input_size / 3)
    memory = jax.random.uniform(
        k_mem, (output_size, input_size), jnp.float32, minval=-stdv, maxval=stdv)
    params = jnp.array([T, momentum], dtype=jnp.float32)

    features = jax.random.normal(k_f, (batch, input_size), jnp.float32)
    transformed_features = jax.random.normal(k_tf, (batch, input_size), jnp.float32)
    indices = jax.random.randint(k_idx, (batch,), 0, output_size, jnp.int32)

    out_tf, out_f, out_sim = linear_average_forward(
        features, transformed_features, indices, memory, params)
    jax.block_until_ready((out_tf, out_f, out_sim))

    # Correctness check against a pure-JAX reference.
    ref_tf, ref_f, ref_sim = _reference_forward(
        features, transformed_features, memory, params)
    assert out_tf.shape == (batch, output_size)
    assert out_f.shape == (batch, output_size)
    assert out_sim.shape == (batch, 1)
    assert jnp.allclose(out_f, ref_f, rtol=1e-4, atol=1e-4)
    assert jnp.allclose(out_tf, ref_tf, rtol=1e-4, atol=1e-4)
    assert jnp.allclose(out_sim, ref_sim, rtol=1e-5, atol=1e-5)

    print("KERNEL_OK")
</pallas_src>

<mosaic_0001>
module attributes {stable_mosaic.version = 11 : i64} {
  func.func @_linear_average_kernel(%arg0: i32, %arg1: memref<16x32xf32, #tpu.memory_space<vmem>>, %arg2: memref<2048x32xf32, #tpu.memory_space<vmem>>, %arg3: memref<8x2048xf32, #tpu.memory_space<vmem>>, %arg4: memref<8x2048xf32, #tpu.memory_space<vmem>>) attributes {dimension_semantics = [#tpu.dimension_semantics<parallel>], iteration_bounds = array<i64: 1>, scalar_prefetch = 0 : i64, scratch_operands = 0 : i64, tpu.core_type = #tpu.core_type<tc>, window_params = [{pipeline_mode = #tpu.pipeline_mode<synchronous>, transform_indices = @transform_0, window_bounds = array<i64: 16, 32>}, {transform_indices = @transform_1, window_bounds = array<i64: 2048, 32>}, {transform_indices = @transform_2, window_bounds = array<i64: 8, 2048>}, {transform_indices = @transform_3, window_bounds = array<i64: 8, 2048>}]} {
    %c0 = arith.constant 0 : index
    %c0_0 = arith.constant 0 : index
    %0 = vector.load %arg1[%c0, %c0_0] : memref<16x32xf32, #tpu.memory_space<vmem>>, vector<16x32xf32>
    %c0_1 = arith.constant 0 : index
    %c0_2 = arith.constant 0 : index
    %1 = vector.load %arg2[%c0_1, %c0_2] : memref<2048x32xf32, #tpu.memory_space<vmem>>, vector<2048x32xf32>
    %cst = arith.constant dense<0.000000e+00> : vector<16x2048xf32>
    %2 = tpu.matmul %0, %1, %cst {dimension_numbers = #tpu.dot_dimension_numbers<[1], [1], [0], [0], [0, 0, 1, 0], [], []>} : vector<16x32xf32>, vector<2048x32xf32>, vector<16x2048xf32> -> vector<16x2048xf32>
    %3 = vector.extract_strided_slice %2 {offsets = [0, 0], sizes = [8, 2048], strides = [1, 1]} : vector<16x2048xf32> to vector<8x2048xf32>
    %c0_3 = arith.constant 0 : index
    %c0_4 = arith.constant 0 : index
    %4 = vector.load %arg4[%c0_3, %c0_4] : memref<8x2048xf32, #tpu.memory_space<vmem>>, vector<8x2048xf32>
    tpu.vector_store %arg4[%c0_3, %c0_4], %3 {strides = array<i32>} : memref<8x2048xf32, #tpu.memory_space<vmem>>, vector<8x2048xf32>,
    %5 = vector.extract_strided_slice %2 {offsets = [8, 0], sizes = [8, 2048], strides = [1, 1]} : vector<16x2048xf32> to vector<8x2048xf32>
    %c0_5 = arith.constant 0 : index
    %c0_6 = arith.constant 0 : index
    %6 = vector.load %arg3[%c0_5, %c0_6] : memref<8x2048xf32, #tpu.memory_space<vmem>>, vector<8x2048xf32>
    tpu.vector_store %arg3[%c0_5, %c0_6], %5 {strides = array<i32>} : memref<8x2048xf32, #tpu.memory_space<vmem>>, vector<8x2048xf32>,
    return
  }
  func.func @transform_0(%arg0: i32) -> (i32, i32) {
    %c0_i32 = arith.constant 0 : i32
    %c0_i32_0 = arith.constant 0 : i32
    %c0_i32_1 = arith.constant 0 : i32
    return %c0_i32, %c0_i32_0 : i32, i32
  }
  func.func @transform_1(%arg0: i32) -> (i32, i32) {
    %c0_i32 = arith.constant 0 : i32
    %c0_i32_0 = arith.constant 0 : i32
    return %arg0, %c0_i32 : i32, i32
  }
  func.func @transform_2(%arg0: i32) -> (i32, i32) {
    %c0_i32 = arith.constant 0 : i32
    %c0_i32_0 = arith.constant 0 : i32
    return %c0_i32, %arg0 : i32, i32
  }
  func.func @transform_3(%arg0: i32) -> (i32, i32) {
    %c0_i32 = arith.constant 0 : i32
    %c0_i32_0 = arith.constant 0 : i32
    return %c0_i32, %arg0 : i32, i32
  }
}

</mosaic_0001>

<llo_original>
// kernel: tpu_custom_call.1
$region0: #{tpu_custom_call.1}
  #allocation0 [shape = 'u32[]', space=smem, size = 0x4, offset = 0x4, fixed_abs, tag = 'smem constant byte address 0x4 - core index']
  #allocation1 [shape = 'u32[72,128]{1,0:T(1,128)}', space=vmem, size = 0x9000, scoped, tag = 'internal scratch']
  %s0 = inlined_call_operand.vmem [shape: f32[16,32], index: 0, kind: input, shape index: {}]
  %s1 = inlined_call_operand.vmem [shape: f32[2048,32], index: 1, kind: input, shape index: {}]
  %s2 = inlined_call_operand.hbm [shape: f32[8,2048], index: 2, kind: output, shape index: {0}]
  %s3 = inlined_call_operand.hbm [shape: f32[8,2048], index: 3, kind: output, shape index: {1}]
  %4 = xla_tuple %s2, %s3
  %s5 = sld [smem:[#allocation0]]
  $region26: #{tpu_custom_call.1} parent=0
    _
  %s7 = ssub.s32 1, %s5
  %s8 = scalar_select 0, %s7, %s5
  $region1: #{tpu_custom_call.1} parent=0
    #allocation2 [shape = 'u8[65536]{0}', space=vmem, size = 0x10000, scoped, tag = 'output window, operand 0, single buffered']
    #allocation3 [shape = 's32[1]{0}', space=sflag, size = 0x4, scoped, tag = 'scoped memory for tpu_custom_call.1']
    #allocation4 [shape = 'u8[65536]{0}', space=vmem, size = 0x10000, scoped, tag = 'output window, operand 1, single buffered']
    #allocation5 [shape = 's32[1]{0}', space=sflag, size = 0x4, scoped, tag = 'scoped memory for tpu_custom_call.1']
    %9 = vsyncpa [#allocation3], 0
    %10 = vsyncpa [#allocation5], 0
    // Predicated region
    $region2: #{tpu_custom_call.1} parent=1 // pred_check
      _
    $region3: #{tpu_custom_call.1} parent=1 // pred_check_branch
      %12 = sbr.rel (0) target = $region5
    $region4: #{tpu_custom_call.1} parent=1 // pred_region
      _
    $region5: #{tpu_custom_call.1} parent=1 // pred_fallthru
      _
    // Predicated region
    $region6: #{tpu_custom_call.1} parent=1 // pred_check
      _
    $region7: #{tpu_custom_call.1} parent=1 // pred_check_branch
      %14 = sbr.rel (0) target = $region9
    $region8: #{tpu_custom_call.1} parent=1 // pred_region
      _
    $region9: #{tpu_custom_call.1} parent=1 // pred_fallthru
      _
    %v15 = vld [vmem:[%s0] sm:$0xff]
    %v16 = vld [vmem:[%s0 + $0x8] sm:$0xff]
    %v17 = vld [vmem:[%s1] sm:$0xff]
    %v18 = vld [vmem:[%s1 + $0x8] sm:$0xff]
    %v19 = vld [vmem:[%s1 + $0x10] sm:$0xff]
    %v20 = vld [vmem:[%s1 + $0x18] sm:$0xff]
    %v21 = vld [vmem:[%s1 + $0x20] sm:$0xff]
    %v22 = vld [vmem:[%s1 + $0x28] sm:$0xff]
    %v23 = vld [vmem:[%s1 + $0x30] sm:$0xff]
    %v24 = vld [vmem:[%s1 + $0x38] sm:$0xff]
    %v25 = vld [vmem:[%s1 + $0x40] sm:$0xff]
    %v26 = vld [vmem:[%s1 + $0x48] sm:$0xff]
    %v27 = vld [vmem:[%s1 + $0x50] sm:$0xff]
    %v28 = vld [vmem:[%s1 + $0x58] sm:$0xff]
    %v29 = vld [vmem:[%s1 + $0x60] sm:$0xff]
    %v30 = vld [vmem:[%s1 + $0x68] sm:$0xff]
    %v31 = vld [vmem:[%s1 + $0x70] sm:$0xff]
    %v32 = vld [vmem:[%s1 + $0x78] sm:$0xff]
    %v33 = vld [vmem:[%s1 + $0x80] sm:$0xff]
    %v34 = vld [vmem:[%s1 + $0x88] sm:$0xff]
    %v35 = vld [vmem:[%s1 + $0x90] sm:$0xff]
    %v36 = vld [vmem:[%s1 + $0x98] sm:$0xff]
    %v37 = vld [vmem:[%s1 + $0xa0] sm:$0xff]
    %v38 = vld [vmem:[%s1 + $0xa8] sm:$0xff]
    %v39 = vld [vmem:[%s1 + $0xb0] sm:$0xff]
    %v40 = vld [vmem:[%s1 + $0xb8] sm:$0xff]
    %v41 = vld [vmem:[%s1 + $0xc0] sm:$0xff]
    %v42 = vld [vmem:[%s1 + $0xc8] sm:$0xff]
    %v43 = vld [vmem:[%s1 + $0xd0] sm:$0xff]
    %v44 = vld [vmem:[%s1 + $0xd8] sm:$0xff]
    %v45 = vld [vmem:[%s1 + $0xe0] sm:$0xff]
    %v46 = vld [vmem:[%s1 + $0xe8] sm:$0xff]
    %v47 = vld [vmem:[%s1 + $0xf0] sm:$0xff]
    %v48 = vld [vmem:[%s1 + $0xf8] sm:$0xff]
    %v49 = vld [vmem:[%s1 + $0x100] sm:$0xff]
    %v50 = vld [vmem:[%s1 + $0x108] sm:$0xff]
    %v51 = vld [vmem:[%s1 + $0x110] sm:$0xff]
    %v52 = vld [vmem:[%s1 + $0x118] sm:$0xff]
    %v53 = vld [vmem:[%s1 + $0x120] sm:$0xff]
    %v54 = vld [vmem:[%s1 + $0x128] sm:$0xff]
    %v55 = vld [vmem:[%s1 + $0x130] sm:$0xff]
    %v56 = vld [vmem:[%s1 + $0x138] sm:$0xff]
    %v57 = vld [vmem:[%s1 + $0x140] sm:$0xff]
    %v58 = vld [vmem:[%s1 + $0x148] sm:$0xff]
    %v59 = vld [vmem:[%s1 + $0x150] sm:$0xff]
    %v60 = vld [vmem:[%s1 + $0x158] sm:$0xff]
    %v61 = vld [vmem:[%s1 + $0x160] sm:$0xff]
    %v62 = vld [vmem:[%s1 + $0x168] sm:$0xff]
    %v63 = vld [vmem:[%s1 + $0x170] sm:$0xff]
    %v64 = vld [vmem:[%s1 + $0x178] sm:$0xff]
    %v65 = vld [vmem:[%s1 + $0x180] sm:$0xff]
    %v66 = vld [vmem:[%s1 + $0x188] sm:$0xff]
    %v67 = vld [vmem:[%s1 + $0x190] sm:$0xff]
    %v68 = vld [vmem:[%s1 + $0x198] sm:$0xff]
    %v69 = vld [vmem:[%s1 + $0x1a0] sm:$0xff]
    %v70 = vld [vmem:[%s1 + $0x1a8] sm:$0xff]
    %v71 = vld [vmem:[%s1 + $0x1b0] sm:$0xff]
    %v72 = vld [vmem:[%s1 + $0x1b8] sm:$0xff]
    %v73 = vld [vmem:[%s1 + $0x1c0] sm:$0xff]
    %v74 = vld [vmem:[%s1 + $0x1c8] sm:$0xff]
    %v75 = vld [vmem:[%s1 + $0x1d0] sm:$0xff]
    %v76 = vld [vmem:[%s1 + $0x1d8] sm:$0xff]
    %v77 = vld [vmem:[%s1 + $0x1e0] sm:$0xff]
    %v78 = vld [vmem:[%s1 + $0x1e8] sm:$0xff]
    %v79 = vld [vmem:[%s1 + $0x1f0] sm:$0xff]
    %v80 = vld [vmem:[%s1 + $0x1f8] sm:$0xff]
    %v81 = vld [vmem:[%s1 + $0x200] sm:$0xff]
    %v82 = vld [vmem:[%s1 + $0x208] sm:$0xff]
    %v83 = vld [vmem:[%s1 + $0x210] sm:$0xff]
    %v84 = vld [vmem:[%s1 + $0x218] sm:$0xff]
    %v85 = vld [vmem:[%s1 + $0x220] sm:$0xff]
    %v86 = vld [vmem:[%s1 + $0x228] sm:$0xff]
    %v87 = vld [vmem:[%s1 + $0x230] sm:$0xff]
    %v88 = vld [vmem:[%s1 + $0x238] sm:$0xff]
    %v89 = vld [vmem:[%s1 + $0x240] sm:$0xff]
    %v90 = vld [vmem:[%s1 + $0x248] sm:$0xff]
    %v91 = vld [vmem:[%s1 + $0x250] sm:$0xff]
    %v92 = vld [vmem:[%s1 + $0x258] sm:$0xff]
    %v93 = vld [vmem:[%s1 + $0x260] sm:$0xff]
    %v94 = vld [vmem:[%s1 + $0x268] sm:$0xff]
    %v95 = vld [vmem:[%s1 + $0x270] sm:$0xff]
    %v96 = vld [vmem:[%s1 + $0x278] sm:$0xff]
    %v97 = vld [vmem:[%s1 + $0x280] sm:$0xff]
    %v98 = vld [vmem:[%s1 + $0x288] sm:$0xff]
    %v99 = vld [vmem:[%s1 + $0x290] sm:$0xff]
    %v100 = vld [vmem:[%s1 + $0x298] sm:$0xff]
    %v101 = vld [vmem:[%s1 + $0x2a0] sm:$0xff]
    %v102 = vld [vmem:[%s1 + $0x2a8] sm:$0xff]
    %v103 = vld [vmem:[%s1 + $0x2b0] sm:$0xff]
    %v104 = vld [vmem:[%s1 + $0x2b8] sm:$0xff]
    %v105 = vld [vmem:[%s1 + $0x2c0] sm:$0xff]
    %v106 = vld [vmem:[%s1 + $0x2c8] sm:$0xff]
    %v107 = vld [vmem:[%s1 + $0x2d0] sm:$0xff]
    %v108 = vld [vmem:[%s1 + $0x2d8] sm:$0xff]
    %v109 = vld [vmem:[%s1 + $0x2e0] sm:$0xff]
    %v110 = vld [vmem:[%s1 + $0x2e8] sm:$0xff]
    %v111 = vld [vmem:[%s1 + $0x2f0] sm:$0xff]
    %v112 = vld [vmem:[%s1 + $0x2f8] sm:$0xff]
    %v113 = vld [vmem:[%s1 + $0x300] sm:$0xff]
    %v114 = vld [vmem:[%s1 + $0x308] sm:$0xff]
    %v115 = vld [vmem:[%s1 + $0x310] sm:$0xff]
    %v116 = vld [vmem:[%s1 + $0x318] sm:$0xff]
    %v117 = vld [vmem:[%s1 + $0x320] sm:$0xff]
    %v118 = vld [vmem:[%s1 + $0x328] sm:$0xff]
    %v119 = vld [vmem:[%s1 + $0x330] sm:$0xff]
    %v120 = vld [vmem:[%s1 + $0x338] sm:$0xff]
    %v121 = vld [vmem:[%s1 + $0x340] sm:$0xff]
    %v122 = vld [vmem:[%s1 + $0x348] sm:$0xff]
    %v123 = vld [vmem:[%s1 + $0x350] sm:$0xff]
    %v124 = vld [vmem:[%s1 + $0x358] sm:$0xff]
    %v125 = vld [vmem:[%s1 + $0x360] sm:$0xff]
    %v126 = vld [vmem:[%s1 + $0x368] sm:$0xff]
    %v127 = vld [vmem:[%s1 + $0x370] sm:$0xff]
    %v128 = vld [vmem:[%s1 + $0x378] sm:$0xff]
    %v129 = vld [vmem:[%s1 + $0x380] sm:$0xff]
    %v130 = vld [vmem:[%s1 + $0x388] sm:$0xff]
    %v131 = vld [vmem:[%s1 + $0x390] sm:$0xff]
    %v132 = vld [vmem:[%s1 + $0x398] sm:$0xff]
    %v133 = vld [vmem:[%s1 + $0x3a0] sm:$0xff]
    %v134 = vld [vmem:[%s1 + $0x3a8] sm:$0xff]
    %v135 = vld [vmem:[%s1 + $0x3b0] sm:$0xff]
    %v136 = vld [vmem:[%s1 + $0x3b8] sm:$0xff]
    %v137 = vld [vmem:[%s1 + $0x3c0] sm:$0xff]
    %v138 = vld [vmem:[%s1 + $0x3c8] sm:$0xff]
    %v139 = vld [vmem:[%s1 + $0x3d0] sm:$0xff]
    %v140 = vld [vmem:[%s1 + $0x3d8] sm:$0xff]
    %v141 = vld [vmem:[%s1 + $0x3e0] sm:$0xff]
    %v142 = vld [vmem:[%s1 + $0x3e8] sm:$0xff]
    %v143 = vld [vmem:[%s1 + $0x3f0] sm:$0xff]
    %v144 = vld [vmem:[%s1 + $0x3f8] sm:$0xff]
    %v145 = vld [vmem:[%s1 + $0x400] sm:$0xff]
    %v146 = vld [vmem:[%s1 + $0x408] sm:$0xff]
    %v147 = vld [vmem:[%s1 + $0x410] sm:$0xff]
    %v148 = vld [vmem:[%s1 + $0x418] sm:$0xff]
    %v149 = vld [vmem:[%s1 + $0x420] sm:$0xff]
    %v150 = vld [vmem:[%s1 + $0x428] sm:$0xff]
    %v151 = vld [vmem:[%s1 + $0x430] sm:$0xff]
    %v152 = vld [vmem:[%s1 + $0x438] sm:$0xff]
    %v153 = vld [vmem:[%s1 + $0x440] sm:$0xff]
    %v154 = vld [vmem:[%s1 + $0x448] sm:$0xff]
    %v155 = vld [vmem:[%s1 + $0x450] sm:$0xff]
    %v156 = vld [vmem:[%s1 + $0x458] sm:$0xff]
    %v157 = vld [vmem:[%s1 + $0x460] sm:$0xff]
    %v158 = vld [vmem:[%s1 + $0x468] sm:$0xff]
    %v159 = vld [vmem:[%s1 + $0x470] sm:$0xff]
    %v160 = vld [vmem:[%s1 + $0x478] sm:$0xff]
    %v161 = vld [vmem:[%s1 + $0x480] sm:$0xff]
    %v162 = vld [vmem:[%s1 + $0x488] sm:$0xff]
    %v163 = vld [vmem:[%s1 + $0x490] sm:$0xff]
    %v164 = vld [vmem:[%s1 + $0x498] sm:$0xff]
    %v165 = vld [vmem:[%s1 + $0x4a0] sm:$0xff]
    %v166 = vld [vmem:[%s1 + $0x4a8] sm:$0xff]
    %v167 = vld [vmem:[%s1 + $0x4b0] sm:$0xff]
    %v168 = vld [vmem:[%s1 + $0x4b8] sm:$0xff]
    %v169 = vld [vmem:[%s1 + $0x4c0] sm:$0xff]
    %v170 = vld [vmem:[%s1 + $0x4c8] sm:$0xff]
    %v171 = vld [vmem:[%s1 + $0x4d0] sm:$0xff]
    %v172 = vld [vmem:[%s1 + $0x4d8] sm:$0xff]
    %v173 = vld [vmem:[%s1 + $0x4e0] sm:$0xff]
    %v174 = vld [vmem:[%s1 + $0x4e8] sm:$0xff]
    %v175 = vld [vmem:[%s1 + $0x4f0] sm:$0xff]
    %v176 = vld [vmem:[%s1 + $0x4f8] sm:$0xff]
    %v177 = vld [vmem:[%s1 + $0x500] sm:$0xff]
    %v178 = vld [vmem:[%s1 + $0x508] sm:$0xff]
    %v179 = vld [vmem:[%s1 + $0x510] sm:$0xff]
    %v180 = vld [vmem:[%s1 + $0x518] sm:$0xff]
    %v181 = vld [vmem:[%s1 + $0x520] sm:$0xff]
    %v182 = vld [vmem:[%s1 + $0x528] sm:$0xff]
    %v183 = vld [vmem:[%s1 + $0x530] sm:$0xff]
    %v184 = vld [vmem:[%s1 + $0x538] sm:$0xff]
    %v185 = vld [vmem:[%s1 + $0x540] sm:$0xff]
    %v186 = vld [vmem:[%s1 + $0x548] sm:$0xff]
    %v187 = vld [vmem:[%s1 + $0x550] sm:$0xff]
    %v188 = vld [vmem:[%s1 + $0x558] sm:$0xff]
    %v189 = vld [vmem:[%s1 + $0x560] sm:$0xff]
    %v190 = vld [vmem:[%s1 + $0x568] sm:$0xff]
    %v191 = vld [vmem:[%s1 + $0x570] sm:$0xff]
    %v192 = vld [vmem:[%s1 + $0x578] sm:$0xff]
    %v193 = vld [vmem:[%s1 + $0x580] sm:$0xff]
    %v194 = vld [vmem:[%s1 + $0x588] sm:$0xff]
    %v195 = vld [vmem:[%s1 + $0x590] sm:$0xff]
    %v196 = vld [vmem:[%s1 + $0x598] sm:$0xff]
    %v197 = vld [vmem:[%s1 + $0x5a0] sm:$0xff]
    %v198 = vld [vmem:[%s1 + $0x5a8] sm:$0xff]
    %v199 = vld [vmem:[%s1 + $0x5b0] sm:$0xff]
    %v200 = vld [vmem:[%s1 + $0x5b8] sm:$0xff]
    %v201 = vld [vmem:[%s1 + $0x5c0] sm:$0xff]
    %v202 = vld [vmem:[%s1 + $0x5c8] sm:$0xff]
    %v203 = vld [vmem:[%s1 + $0x5d0] sm:$0xff]
    %v204 = vld [vmem:[%s1 + $0x5d8] sm:$0xff]
    %v205 = vld [vmem:[%s1 + $0x5e0] sm:$0xff]
    %v206 = vld [vmem:[%s1 + $0x5e8] sm:$0xff]
    %v207 = vld [vmem:[%s1 + $0x5f0] sm:$0xff]
    %v208 = vld [vmem:[%s1 + $0x5f8] sm:$0xff]
    %v209 = vld [vmem:[%s1 + $0x600] sm:$0xff]
    %v210 = vld [vmem:[%s1 + $0x608] sm:$0xff]
    %v211 = vld [vmem:[%s1 + $0x610] sm:$0xff]
    %v212 = vld [vmem:[%s1 + $0x618] sm:$0xff]
    %v213 = vld [vmem:[%s1 + $0x620] sm:$0xff]
    %v214 = vld [vmem:[%s1 + $0x628] sm:$0xff]
    %v215 = vld [vmem:[%s1 + $0x630] sm:$0xff]
    %v216 = vld [vmem:[%s1 + $0x638] sm:$0xff]
    %v217 = vld [vmem:[%s1 + $0x640] sm:$0xff]
    %v218 = vld [vmem:[%s1 + $0x648] sm:$0xff]
    %v219 = vld [vmem:[%s1 + $0x650] sm:$0xff]
    %v220 = vld [vmem:[%s1 + $0x658] sm:$0xff]
    %v221 = vld [vmem:[%s1 + $0x660] sm:$0xff]
    %v222 = vld [vmem:[%s1 + $0x668] sm:$0xff]
    %v223 = vld [vmem:[%s1 + $0x670] sm:$0xff]
    %v224 = vld [vmem:[%s1 + $0x678] sm:$0xff]
    %v225 = vld [vmem:[%s1 + $0x680] sm:$0xff]
    %v226 = vld [vmem:[%s1 + $0x688] sm:$0xff]
    %v227 = vld [vmem:[%s1 + $0x690] sm:$0xff]
    %v228 = vld [vmem:[%s1 + $0x698] sm:$0xff]
    %v229 = vld [vmem:[%s1 + $0x6a0] sm:$0xff]
    %v230 = vld [vmem:[%s1 + $0x6a8] sm:$0xff]
    %v231 = vld [vmem:[%s1 + $0x6b0] sm:$0xff]
    %v232 = vld [vmem:[%s1 + $0x6b8] sm:$0xff]
    %v233 = vld [vmem:[%s1 + $0x6c0] sm:$0xff]
    %v234 = vld [vmem:[%s1 + $0x6c8] sm:$0xff]
    %v235 = vld [vmem:[%s1 + $0x6d0] sm:$0xff]
    %v236 = vld [vmem:[%s1 + $0x6d8] sm:$0xff]
    %v237 = vld [vmem:[%s1 + $0x6e0] sm:$0xff]
    %v238 = vld [vmem:[%s1 + $0x6e8] sm:$0xff]
    %v239 = vld [vmem:[%s1 + $0x6f0] sm:$0xff]
    %v240 = vld [vmem:[%s1 + $0x6f8] sm:$0xff]
    %v241 = vld [vmem:[%s1 + $0x700] sm:$0xff]
    %v242 = vld [vmem:[%s1 + $0x708] sm:$0xff]
    %v243 = vld [vmem:[%s1 + $0x710] sm:$0xff]
    %v244 = vld [vmem:[%s1 + $0x718] sm:$0xff]
    %v245 = vld [vmem:[%s1 + $0x720] sm:$0xff]
    %v246 = vld [vmem:[%s1 + $0x728] sm:$0xff]
    %v247 = vld [vmem:[%s1 + $0x730] sm:$0xff]
    %v248 = vld [vmem:[%s1 + $0x738] sm:$0xff]
    %v249 = vld [vmem:[%s1 + $0x740] sm:$0xff]
    %v250 = vld [vmem:[%s1 + $0x748] sm:$0xff]
    %v251 = vld [vmem:[%s1 + $0x750] sm:$0xff]
    %v252 = vld [vmem:[%s1 + $0x758] sm:$0xff]
    %v253 = vld [vmem:[%s1 + $0x760] sm:$0xff]
    %v254 = vld [vmem:[%s1 + $0x768] sm:$0xff]
    %v255 = vld [vmem:[%s1 + $0x770] sm:$0xff]
    %v256 = vld [vmem:[%s1 + $0x778] sm:$0xff]
    %v257 = vld [vmem:[%s1 + $0x780] sm:$0xff]
    %v258 = vld [vmem:[%s1 + $0x788] sm:$0xff]
    %v259 = vld [vmem:[%s1 + $0x790] sm:$0xff]
    %v260 = vld [vmem:[%s1 + $0x798] sm:$0xff]
    %v261 = vld [vmem:[%s1 + $0x7a0] sm:$0xff]
    %v262 = vld [vmem:[%s1 + $0x7a8] sm:$0xff]
    %v263 = vld [vmem:[%s1 + $0x7b0] sm:$0xff]
    %v264 = vld [vmem:[%s1 + $0x7b8] sm:$0xff]
    %v265 = vld [vmem:[%s1 + $0x7c0] sm:$0xff]
    %v266 = vld [vmem:[%s1 + $0x7c8] sm:$0xff]
    %v267 = vld [vmem:[%s1 + $0x7d0] sm:$0xff]
    %v268 = vld [vmem:[%s1 + $0x7d8] sm:$0xff]
    %v269 = vld [vmem:[%s1 + $0x7e0] sm:$0xff]
    %v270 = vld [vmem:[%s1 + $0x7e8] sm:$0xff]
    %v271 = vld [vmem:[%s1 + $0x7f0] sm:$0xff]
    %v272 = vld [vmem:[%s1 + $0x7f8] sm:$0xff]
    %vm273 = vcmask 261120
    %v275 = vsel %vm273, %v15, 0
    %v278 = vsel %vm273, %v16, 0
    %v281 = vsel %vm273, %v17, 0
    %v284 = vsel %vm273, %v18, 0
    %v287 = vsel %vm273, %v19, 0
    %v290 = vsel %vm273, %v20, 0
    %v293 = vsel %vm273, %v21, 0
    %v296 = vsel %vm273, %v22, 0
    %v299 = vsel %vm273, %v23, 0
    %v302 = vsel %vm273, %v24, 0
    %v305 = vsel %vm273, %v25, 0
    %v308 = vsel %vm273, %v26, 0
    %v311 = vsel %vm273, %v27, 0
    %v314 = vsel %vm273, %v28, 0
    %v317 = vsel %vm273, %v29, 0
    %v320 = vsel %vm273, %v30, 0
    %v323 = vsel %vm273, %v31, 0
    %v326 = vsel %vm273, %v32, 0
    %v329 = vsel %vm273, %v33, 0
    %v332 = vsel %vm273, %v34, 0
    %v335 = vsel %vm273, %v35, 0
    %v338 = vsel %vm273, %v36, 0
    %v341 = vsel %vm273, %v37, 0
    %v344 = vsel %vm273, %v38, 0
    %v347 = vsel %vm273, %v39, 0
    %v350 = vsel %vm273, %v40, 0
    %v353 = vsel %vm273, %v41, 0
    %v356 = vsel %vm273, %v42, 0
    %v359 = vsel %vm273, %v43, 0
    %v362 = vsel %vm273, %v44, 0
    %v365 = vsel %vm273, %v45, 0
    %v368 = vsel %vm273, %v46, 0
    %v371 = vsel %vm273, %v47, 0
    %v374 = vsel %vm273, %v48, 0
    %v377 = vsel %vm273, %v49, 0
    %v380 = vsel %vm273, %v50, 0
    %v383 = vsel %vm273, %v51, 0
    %v386 = vsel %vm273, %v52, 0
    %v389 = vsel %vm273, %v53, 0
    %v392 = vsel %vm273, %v54, 0
    %v395 = vsel %vm273, %v55, 0
    %v398 = vsel %vm273, %v56, 0
    %v401 = vsel %vm273, %v57, 0
    %v404 = vsel %vm273, %v58, 0
    %v407 = vsel %vm273, %v59, 0
    %v410 = vsel %vm273, %v60, 0
    %v413 = vsel %vm273, %v61, 0
    %v416 = vsel %vm273, %v62, 0
    %v419 = vsel %vm273, %v63, 0
    %v422 = vsel %vm273, %v64, 0
    %v425 = vsel %vm273, %v65, 0
    %v428 = vsel %vm273, %v66, 0
    %v431 = vsel %vm273, %v67, 0
    %v434 = vsel %vm273, %v68, 0
    %v437 = vsel %vm273, %v69, 0
    %v440 = vsel %vm273, %v70, 0
    %v443 = vsel %vm273, %v71, 0
    %v446 = vsel %vm273, %v72, 0
    %v449 = vsel %vm273, %v73, 0
    %v452 = vsel %vm273, %v74, 0
    %v455 = vsel %vm273, %v75, 0
    %v458 = vsel %vm273, %v76, 0
    %v461 = vsel %vm273, %v77, 0
    %v464 = vsel %vm273, %v78, 0
    %v467 = vsel %vm273, %v79, 0
    %v470 = vsel %vm273, %v80, 0
    %v473 = vsel %vm273, %v81, 0
    %v476 = vsel %vm273, %v82, 0
    %v479 = vsel %vm273, %v83, 0
    %v482 = vsel %vm273, %v84, 0
    %v485 = vsel %vm273, %v85, 0
    %v488 = vsel %vm273, %v86, 0
    %v491 = vsel %vm273, %v87, 0
    %v494 = vsel %vm273, %v88, 0
    %v497 = vsel %vm273, %v89, 0
    %v500 = vsel %vm273, %v90, 0
    %v503 = vsel %vm273, %v91, 0
    %v506 = vsel %vm273, %v92, 0
    %v509 = vsel %vm273, %v93, 0
    %v512 = vsel %vm273, %v94, 0
    %v515 = vsel %vm273, %v95, 0
    %v518 = vsel %vm273, %v96, 0
    %v521 = vsel %vm273, %v97, 0
    %v524 = vsel %vm273, %v98, 0
    %v527 = vsel %vm273, %v99, 0
    %v530 = vsel %vm273, %v100, 0
    %v533 = vsel %vm273, %v101, 0
    %v536 = vsel %vm273, %v102, 0
    %v539 = vsel %vm273, %v103, 0
    %v542 = vsel %vm273, %v104, 0
    %v545 = vsel %vm273, %v105, 0
    %v548 = vsel %vm273, %v106, 0
    %v551 = vsel %vm273, %v107, 0
    %v554 = vsel %vm273, %v108, 0
    %v557 = vsel %vm273, %v109, 0
    %v560 = vsel %vm273, %v110, 0
    %v563 = vsel %vm273, %v111, 0
    %v566 = vsel %vm273, %v112, 0
    %v569 = vsel %vm273, %v113, 0
    %v572 = vsel %vm273, %v114, 0
    %v575 = vsel %vm273, %v115, 0
    %v578 = vsel %vm273, %v116, 0
    %v581 = vsel %vm273, %v117, 0
    %v584 = vsel %vm273, %v118, 0
    %v587 = vsel %vm273, %v119, 0
    %v590 = vsel %vm273, %v120, 0
    %v593 = vsel %vm273, %v121, 0
    %v596 = vsel %vm273, %v122, 0
    %v599 = vsel %vm273, %v123, 0
    %v602 = vsel %vm273, %v124, 0
    %v605 = vsel %vm273, %v125, 0
    %v608 = vsel %vm273, %v126, 0
    %v611 = vsel %vm273, %v127, 0
    %v614 = vsel %vm273, %v128, 0
    %v617 = vsel %vm273, %v129, 0
    %v620 = vsel %vm273, %v130, 0
    %v623 = vsel %vm273, %v131, 0
    %v626 = vsel %vm273, %v132, 0
    %v629 = vsel %vm273, %v133, 0
    %v632 = vsel %vm273, %v134, 0
    %v635 = vsel %vm273, %v135, 0
    %v638 = vsel %vm273, %v136, 0
    %v641 = vsel %vm273, %v137, 0
    %v644 = vsel %vm273, %v138, 0
    %v647 = vsel %vm273, %v139, 0
    %v650 = vsel %vm273, %v140, 0
    %v653 = vsel %vm273, %v141, 0
    %v656 = vsel %vm273, %v142, 0
    %v659 = vsel %vm273, %v143, 0
    %v662 = vsel %vm273, %v144, 0
    %v665 = vsel %vm273, %v145, 0
    %v668 = vsel %vm273, %v146, 0
    %v671 = vsel %vm273, %v147, 0
    %v674 = vsel %vm273, %v148, 0
    %v677 = vsel %vm273, %v149, 0
    %v680 = vsel %vm273, %v150, 0
    %v683 = vsel %vm273, %v151, 0
    %v686 = vsel %vm273, %v152, 0
    %v689 = vsel %vm273, %v153, 0
    %v692 = vsel %vm273, %v154, 0
    %v695 = vsel %vm273, %v155, 0
    %v698 = vsel %vm273, %v156, 0
    %v701 = vsel %vm273, %v157, 0
    %v704 = vsel %vm273, %v158, 0
    %v707 = vsel %vm273, %v159, 0
    %v710 = vsel %vm273, %v160, 0
    %v713 = vsel %vm273, %v161, 0
    %v716 = vsel %vm273, %v162, 0
    %v719 = vsel %vm273, %v163, 0
    %v722 = vsel %vm273, %v164, 0
    %v725 = vsel %vm273, %v165, 0
    %v728 = vsel %vm273, %v166, 0
    %v731 = vsel %vm273, %v167, 0
    %v734 = vsel %vm273, %v168, 0
    %v737 = vsel %vm273, %v169, 0
    %v740 = vsel %vm273, %v170, 0
    %v743 = vsel %vm273, %v171, 0
    %v746 = vsel %vm273, %v172, 0
    %v749 = vsel %vm273, %v173, 0
    %v752 = vsel %vm273, %v174, 0
    %v755 = vsel %vm273, %v175, 0
    %v758 = vsel %vm273, %v176, 0
    %v761 = vsel %vm273, %v177, 0
    %v764 = vsel %vm273, %v178, 0
    %v767 = vsel %vm273, %v179, 0
    %v770 = vsel %vm273, %v180, 0
    %v773 = vsel %vm273, %v181, 0
    %v776 = vsel %vm273, %v182, 0
    %v779 = vsel %vm273, %v183, 0
    %v782 = vsel %vm273, %v184, 0
    %v785 = vsel %vm273, %v185, 0
    %v788 = vsel %vm273, %v186, 0
    %v791 = vsel %vm273, %v187, 0
    %v794 = vsel %vm273, %v188, 0
    %v797 = vsel %vm273, %v189, 0
    %v800 = vsel %vm273, %v190, 0
    %v803 = vsel %vm273, %v191, 0
    %v806 = vsel %vm273, %v192, 0
    %v809 = vsel %vm273, %v193, 0
    %v812 = vsel %vm273, %v194, 0
    %v815 = vsel %vm273, %v195, 0
    %v818 = vsel %vm273, %v196, 0
    %v821 = vsel %vm273, %v197, 0
    %v824 = vsel %vm273, %v198, 0
    %v827 = vsel %vm273, %v199, 0
    %v830 = vsel %vm273, %v200, 0
    %v833 = vsel %vm273, %v201, 0
    %v836 = vsel %vm273, %v202, 0
    %v839 = vsel %vm273, %v203, 0
    %v842 = vsel %vm273, %v204, 0
    %v845 = vsel %vm273, %v205, 0
    %v848 = vsel %vm273, %v206, 0
    %v851 = vsel %vm273, %v207, 0
    %v854 = vsel %vm273, %v208, 0
    %v857 = vsel %vm273, %v209, 0
    %v860 = vsel %vm273, %v210, 0
    %v863 = vsel %vm273, %v211, 0
    %v866 = vsel %vm273, %v212, 0
    %v869 = vsel %vm273, %v213, 0
    %v872 = vsel %vm273, %v214, 0
    %v875 = vsel %vm273, %v215, 0
    %v878 = vsel %vm273, %v216, 0
    %v881 = vsel %vm273, %v217, 0
    %v884 = vsel %vm273, %v218, 0
    %v887 = vsel %vm273, %v219, 0
    %v890 = vsel %vm273, %v220, 0
    %v893 = vsel %vm273, %v221, 0
    %v896 = vsel %vm273, %v222, 0
    %v899 = vsel %vm273, %v223, 0
    %v902 = vsel %vm273, %v224, 0
    %v905 = vsel %vm273, %v225, 0
    %v908 = vsel %vm273, %v226, 0
    %v911 = vsel %vm273, %v227, 0
    %v914 = vsel %vm273, %v228, 0
    %v917 = vsel %vm273, %v229, 0
    %v920 = vsel %vm273, %v230, 0
    %v923 = vsel %vm273, %v231, 0
    %v926 = vsel %vm273, %v232, 0
    %v929 = vsel %vm273, %v233, 0
    %v932 = vsel %vm273, %v234, 0
    %v935 = vsel %vm273, %v235, 0
    %v938 = vsel %vm273, %v236, 0
    %v941 = vsel %vm273, %v237, 0
    %v944 = vsel %vm273, %v238, 0
    %v947 = vsel %vm273, %v239, 0
    %v950 = vsel %vm273, %v240, 0
    %v953 = vsel %vm273, %v241, 0
    %v956 = vsel %vm273, %v242, 0
    %v959 = vsel %vm273, %v243, 0
    %v962 = vsel %vm273, %v244, 0
    %v965 = vsel %vm273, %v245, 0
    %v968 = vsel %vm273, %v246, 0
    %v971 = vsel %vm273, %v247, 0
    %v974 = vsel %vm273, %v248, 0
    %v977 = vsel %vm273, %v249, 0
    %v980 = vsel %vm273, %v250, 0
    %v983 = vsel %vm273, %v251, 0
    %v986 = vsel %vm273, %v252, 0
    %v989 = vsel %vm273, %v253, 0
    %v992 = vsel %vm273, %v254, 0
    %v995 = vsel %vm273, %v255, 0
    %v998 = vsel %vm273, %v256, 0
    %v1001 = vsel %vm273, %v257, 0
    %v1004 = vsel %vm273, %v258, 0
    %v1007 = vsel %vm273, %v259, 0
    %v1010 = vsel %vm273, %v260, 0
    %v1013 = vsel %vm273, %v261, 0
    %v1016 = vsel %vm273, %v262, 0
    %v1019 = vsel %vm273, %v263, 0
    %v1022 = vsel %vm273, %v264, 0
    %v1025 = vsel %vm273, %v265, 0
    %v1028 = vsel %vm273, %v266, 0
    %v1031 = vsel %vm273, %v267, 0
    %v1034 = vsel %vm273, %v268, 0
    %v1037 = vsel %vm273, %v269, 0
    %v1040 = vsel %vm273, %v270, 0
    %v1043 = vsel %vm273, %v271, 0
    %v1046 = vsel %vm273, %v272, 0
    %1048 = vmatpush.xpose.msra.mxu0 %v326
    %1049 = vmatpush.xpose.msra.mxu0 %v323
    %1050 = vmatpush.xpose.msra.mxu0 %v320
    %1051 = vmatpush.xpose.msra.mxu0 %v317
    %1052 = vmatpush.xpose.msra.mxu0 %v314
    %1053 = vmatpush.xpose.msra.mxu0 %v311
    %1054 = vmatpush.xpose.msra.mxu0 %v308
    %1055 = vmatpush.xpose.msra.mxu0 %v305
    %1056 = vmatpush.xpose.msra.mxu0 %v302
    %1057 = vmatpush.xpose.msra.mxu0 %v299
    %1058 = vmatpush.xpose.msra.mxu0 %v296
    %1059 = vmatpush.xpose.msra.mxu0 %v293
    %1060 = vmatpush.xpose.msra.mxu0 %v290
    %1061 = vmatpush.xpose.msra.mxu0 %v287
    %1062 = vmatpush.xpose.msra.mxu0 %v284
    %1063 = vmatpush.xpose.msra.mxu0 %v281
    %1064 = vmatmul.f32.gmra.mxu0 %v275
    %v1065 = vpop.f32.mrf.mxu0
    %v1066 = vadd.f32 0.0, %v1065
    %1067 = vmatmul.f32.gmra.mxu0 %v278
    %v1068 = vpop.f32.mrf.mxu0
    %v1069 = vadd.f32 0.0, %v1068
    %1070 = vdwg.mxu0
    %1071 = vmatpush.xpose.msra.mxu0 %v374
    %1072 = vmatpush.xpose.msra.mxu0 %v371
    %1073 = vmatpush.xpose.msra.mxu0 %v368
    %1074 = vmatpush.xpose.msra.mxu0 %v365
    %1075 = vmatpush.xpose.msra.mxu0 %v362
    %1076 = vmatpush.xpose.msra.mxu0 %v359
    %1077 = vmatpush.xpose.msra.mxu0 %v356
    %1078 = vmatpush.xpose.msra.mxu0 %v353
    %1079 = vmatpush.xpose.msra.mxu0 %v350
    %1080 = vmatpush.xpose.msra.mxu0 %v347
    %1081 = vmatpush.xpose.msra.mxu0 %v344
    %1082 = vmatpush.xpose.msra.mxu0 %v341
    %1083 = vmatpush.xpose.msra.mxu0 %v338
    %1084 = vmatpush.xpose.msra.mxu0 %v335
    %1085 = vmatpush.xpose.msra.mxu0 %v332
    %1086 = vmatpush.xpose.msra.mxu0 %v329
    %1087 = vmatmul.f32.gmra.mxu0 %v275
    %v1088 = vpop.f32.mrf.mxu0
    %v1089 = vadd.f32 0.0, %v1088
    %1090 = vmatmul.f32.gmra.mxu0 %v278
    %v1091 = vpop.f32.mrf.mxu0
    %v1092 = vadd.f32 0.0, %v1091
    %1093 = vdwg.mxu0
    %1094 = vmatpush.xpose.msra.mxu0 %v422
    %1095 = vmatpush.xpose.msra.mxu0 %v419
    %1096 = vmatpush.xpose.msra.mxu0 %v416
    %1097 = vmatpush.xpose.msra.mxu0 %v413
    %1098 = vmatpush.xpose.msra.mxu0 %v410
    %1099 = vmatpush.xpose.msra.mxu0 %v407
    %1100 = vmatpush.xpose.msra.mxu0 %v404
    %1101 = vmatpush.xpose.msra.mxu0 %v401
    %1102 = vmatpush.xpose.msra.mxu0 %v398
    %1103 = vmatpush.xpose.msra.mxu0 %v395
    %1104 = vmatpush.xpose.msra.mxu0 %v392
    %1105 = vmatpush.xpose.msra.mxu0 %v389
    %1106 = vmatpush.xpose.msra.mxu0 %v386
    %1107 = vmatpush.xpose.msra.mxu0 %v383
    %1108 = vmatpush.xpose.msra.mxu0 %v380
    %1109 = vmatpush.xpose.msra.mxu0 %v377
    %1110 = vmatmul.f32.gmra.mxu0 %v275
    %v1111 = vpop.f32.mrf.mxu0
    %v1112 = vadd.f32 0.0, %v1111
    %1113 = vmatmul.f32.gmra.mxu0 %v278
    %v1114 = vpop.f32.mrf.mxu0
    %v1115 = vadd.f32 0.0, %v1114
    %1116 = vdwg.mxu0
    %1117 = vmatpush.xpose.msra.mxu0 %v470
    %1118 = vmatpush.xpose.msra.mxu0 %v467
    %1119 = vmatpush.xpose.msra.mxu0 %v464
    %1120 = vmatpush.xpose.msra.mxu0 %v461
    %1121 = vmatpush.xpose.msra.mxu0 %v458
    %1122 = vmatpush.xpose.msra.mxu0 %v455
    %1123 = vmatpush.xpose.msra.mxu0 %v452
    %1124 = vmatpush.xpose.msra.mxu0 %v449
    %1125 = vmatpush.xpose.msra.mxu0 %v446
    %1126 = vmatpush.xpose.msra.mxu0 %v443
    %1127 = vmatpush.xpose.msra.mxu0 %v440
    %1128 = vmatpush.xpose.msra.mxu0 %v437
    %1129 = vmatpush.xpose.msra.mxu0 %v434
    %1130 = vmatpush.xpose.msra.mxu0 %v431
    %1131 = vmatpush.xpose.msra.mxu0 %v428
    %1132 = vmatpush.xpose.msra.mxu0 %v425
    %1133 = vmatmul.f32.gmra.mxu0 %v275
    %v1134 = vpop.f32.mrf.mxu0
    %v1135 = vadd.f32 0.0, %v1134
    %1136 = vmatmul.f32.gmra.mxu0 %v278
    %v1137 = vpop.f32.mrf.mxu0
    %v1138 = vadd.f32 0.0, %v1137
    %1139 = vdwg.mxu0
    %1140 = vmatpush.xpose.msra.mxu0 %v518
    %1141 = vmatpush.xpose.msra.mxu0 %v515
    %1142 = vmatpush.xpose.msra.mxu0 %v512
    %1143 = vmatpush.xpose.msra.mxu0 %v509
    %1144 = vmatpush.xpose.msra.mxu0 %v506
    %1145 = vmatpush.xpose.msra.mxu0 %v503
    %1146 = vmatpush.xpose.msra.mxu0 %v500
    %1147 = vmatpush.xpose.msra.mxu0 %v497
    %1148 = vmatpush.xpose.msra.mxu0 %v494
    %1149 = vmatpush.xpose.msra.mxu0 %v491
    %1150 = vmatpush.xpose.msra.mxu0 %v488
    %1151 = vmatpush.xpose.msra.mxu0 %v485
    %1152 = vmatpush.xpose.msra.mxu0 %v482
    %1153 = vmatpush.xpose.msra.mxu0 %v479
    %1154 = vmatpush.xpose.msra.mxu0 %v476
    %1155 = vmatpush.xpose.msra.mxu0 %v473
    %1156 = vmatmul.f32.gmra.mxu0 %v275
    %v1157 = vpop.f32.mrf.mxu0
    %v1158 = vadd.f32 0.0, %v1157
    %1159 = vmatmul.f32.gmra.mxu0 %v278
    %v1160 = vpop.f32.mrf.mxu0
    %v1161 = vadd.f32 0.0, %v1160
    %1162 = vdwg.mxu0
    %1163 = vmatpush.xpose.msra.mxu0 %v566
    %1164 = vmatpush.xpose.msra.mxu0 %v563
    %1165 = vmatpush.xpose.msra.mxu0 %v560
    %1166 = vmatpush.xpose.msra.mxu0 %v557
    %1167 = vmatpush.xpose.msra.mxu0 %v554
    %1168 = vmatpush.xpose.msra.mxu0 %v551
    %1169 = vmatpush.xpose.msra.mxu0 %v548
    %1170 = vmatpush.xpose.msra.mxu0 %v545
    %1171 = vmatpush.xpose.msra.mxu0 %v542
    %1172 = vmatpush.xpose.msra.mxu0 %v539
    %1173 = vmatpush.xpose.msra.mxu0 %v536
    %1174 = vmatpush.xpose.msra.mxu0 %v533
    %1175 = vmatpush.xpose.msra.mxu0 %v530
    %1176 = vmatpush.xpose.msra.mxu0 %v527
    %1177 = vmatpush.xpose.msra.mxu0 %v524
    %1178 = vmatpush.xpose.msra.mxu0 %v521
    %1179 = vmatmul.f32.gmra.mxu0 %v275
    %v1180 = vpop.f32.mrf.mxu0
    %v1181 = vadd.f32 0.0, %v1180
    %1182 = vmatmul.f32.gmra.mxu0 %v278
    %v1183 = vpop.f32.mrf.mxu0
    %v1184 = vadd.f32 0.0, %v1183
    %1185 = vdwg.mxu0
    %1186 = vmatpush.xpose.msra.mxu0 %v614
    %1187 = vmatpush.xpose.msra.mxu0 %v611
    %1188 = vmatpush.xpose.msra.mxu0 %v608
    %1189 = vmatpush.xpose.msra.mxu0 %v605
    %1190 = vmatpush.xpose.msra.mxu0 %v602
    %1191 = vmatpush.xpose.msra.mxu0 %v599
    %1192 = vmatpush.xpose.msra.mxu0 %v596
    %1193 = vmatpush.xpose.msra.mxu0 %v593
    %1194 = vmatpush.xpose.msra.mxu0 %v590
    %1195 = vmatpush.xpose.msra.mxu0 %v587
    %1196 = vmatpush.xpose.msra.mxu0 %v584
    %1197 = vmatpush.xpose.msra.mxu0 %v581
    %1198 = vmatpush.xpose.msra.mxu0 %v578
    %1199 = vmatpush.xpose.msra.mxu0 %v575
    %1200 = vmatpush.xpose.msra.mxu0 %v572
    %1201 = vmatpush.xpose.msra.mxu0 %v569
    %1202 = vmatmul.f32.gmra.mxu0 %v275
    %v1203 = vpop.f32.mrf.mxu0
    %v1204 = vadd.f32 0.0, %v1203
    %1205 = vmatmul.f32.gmra.mxu0 %v278
    %v1206 = vpop.f32.mrf.mxu0
    %v1207 = vadd.f32 0.0, %v1206
    %1208 = vdwg.mxu0
    %1209 = vmatpush.xpose.msra.mxu0 %v662
    %1210 = vmatpush.xpose.msra.mxu0 %v659
    %1211 = vmatpush.xpose.msra.mxu0 %v656
    %1212 = vmatpush.xpose.msra.mxu0 %v653
    %1213 = vmatpush.xpose.msra.mxu0 %v650
    %1214 = vmatpush.xpose.msra.mxu0 %v647
    %1215 = vmatpush.xpose.msra.mxu0 %v644
    %1216 = vmatpush.xpose.msra.mxu0 %v641
    %1217 = vmatpush.xpose.msra.mxu0 %v638
    %1218 = vmatpush.xpose.msra.mxu0 %v635
    %1219 = vmatpush.xpose.msra.mxu0 %v632
    %1220 = vmatpush.xpose.msra.mxu0 %v629
    %1221 = vmatpush.xpose.msra.mxu0 %v626
    %1222 = vmatpush.xpose.msra.mxu0 %v623
    %1223 = vmatpush.xpose.msra.mxu0 %v620
    %1224 = vmatpush.xpose.msra.mxu0 %v617
    %1225 = vmatmul.f32.gmra.mxu0 %v275
    %v1226 = vpop.f32.mrf.mxu0
    %v1227 = vadd.f32 0.0, %v1226
    %1228 = vmatmul.f32.gmra.mxu0 %v278
    %v1229 = vpop.f32.mrf.mxu0
    %v1230 = vadd.f32 0.0, %v1229
    %1231 = vdwg.mxu0
    %1232 = vmatpush.xpose.msra.mxu0 %v710
    %1233 = vmatpush.xpose.msra.mxu0 %v707
    %1234 = vmatpush.xpose.msra.mxu0 %v704
    %1235 = vmatpush.xpose.msra.mxu0 %v701
    %1236 = vmatpush.xpose.msra.mxu0 %v698
    %1237 = vmatpush.xpose.msra.mxu0 %v695
    %1238 = vmatpush.xpose.msra.mxu0 %v692
    %1239 = vmatpush.xpose.msra.mxu0 %v689
    %1240 = vmatpush.xpose.msra.mxu0 %v686
    %1241 = vmatpush.xpose.msra.mxu0 %v683
    %1242 = vmatpush.xpose.msra.mxu0 %v680
    %1243 = vmatpush.xpose.msra.mxu0 %v677
    %1244 = vmatpush.xpose.msra.mxu0 %v674
    %1245 = vmatpush.xpose.msra.mxu0 %v671
    %1246 = vmatpush.xpose.msra.mxu0 %v668
    %1247 = vmatpush.xpose.msra.mxu0 %v665
    %1248 = vmatmul.f32.gmra.mxu0 %v275
    %v1249 = vpop.f32.mrf.mxu0
    %v1250 = vadd.f32 0.0, %v1249
    %1251 = vmatmul.f32.gmra.mxu0 %v278
    %v1252 = vpop.f32.mrf.mxu0
    %v1253 = vadd.f32 0.0, %v1252
    %1254 = vdwg.mxu0
    %1255 = vmatpush.xpose.msra.mxu0 %v758
    %1256 = vmatpush.xpose.msra.mxu0 %v755
    %1257 = vmatpush.xpose.msra.mxu0 %v752
    %1258 = vmatpush.xpose.msra.mxu0 %v749
    %1259 = vmatpush.xpose.msra.mxu0 %v746
    %1260 = vmatpush.xpose.msra.mxu0 %v743
    %1261 = vmatpush.xpose.msra.mxu0 %v740
    %1262 = vmatpush.xpose.msra.mxu0 %v737
    %1263 = vmatpush.xpose.msra.mxu0 %v734
    %1264 = vmatpush.xpose.msra.mxu0 %v731
    %1265 = vmatpush.xpose.msra.mxu0 %v728
    %1266 = vmatpush.xpose.msra.mxu0 %v725
    %1267 = vmatpush.xpose.msra.mxu0 %v722
    %1268 = vmatpush.xpose.msra.mxu0 %v719
    %1269 = vmatpush.xpose.msra.mxu0 %v716
    %1270 = vmatpush.xpose.msra.mxu0 %v713
    %1271 = vmatmul.f32.gmra.mxu0 %v275
    %v1272 = vpop.f32.mrf.mxu0
    %v1273 = vadd.f32 0.0, %v1272
    %1274 = vmatmul.f32.gmra.mxu0 %v278
    %v1275 = vpop.f32.mrf.mxu0
    %v1276 = vadd.f32 0.0, %v1275
    %1277 = vdwg.mxu0
    %1278 = vmatpush.xpose.msra.mxu0 %v806
    %1279 = vmatpush.xpose.msra.mxu0 %v803
    %1280 = vmatpush.xpose.msra.mxu0 %v800
    %1281 = vmatpush.xpose.msra.mxu0 %v797
    %1282 = vmatpush.xpose.msra.mxu0 %v794
    %1283 = vmatpush.xpose.msra.mxu0 %v791
    %1284 = vmatpush.xpose.msra.mxu0 %v788
    %1285 = vmatpush.xpose.msra.mxu0 %v785
    %1286 = vmatpush.xpose.msra.mxu0 %v782
    %1287 = vmatpush.xpose.msra.mxu0 %v779
    %1288 = vmatpush.xpose.msra.mxu0 %v776
    %1289 = vmatpush.xpose.msra.mxu0 %v773
    %1290 = vmatpush.xpose.msra.mxu0 %v770
    %1291 = vmatpush.xpose.msra.mxu0 %v767
    %1292 = vmatpush.xpose.msra.mxu0 %v764
    %1293 = vmatpush.xpose.msra.mxu0 %v761
    %1294 = vmatmul.f32.gmra.mxu0 %v275
    %v1295 = vpop.f32.mrf.mxu0
    %v1296 = vadd.f32 0.0, %v1295
    %1297 = vmatmul.f32.gmra.mxu0 %v278
    %v1298 = vpop.f32.mrf.mxu0
    %v1299 = vadd.f32 0.0, %v1298
    %1300 = vdwg.mxu0
    %1301 = vmatpush.xpose.msra.mxu0 %v854
    %1302 = vmatpush.xpose.msra.mxu0 %v851
    %1303 = vmatpush.xpose.msra.mxu0 %v848
    %1304 = vmatpush.xpose.msra.mxu0 %v845
    %1305 = vmatpush.xpose.msra.mxu0 %v842
    %1306 = vmatpush.xpose.msra.mxu0 %v839
    %1307 = vmatpush.xpose.msra.mxu0 %v836
    %1308 = vmatpush.xpose.msra.mxu0 %v833
    %1309 = vmatpush.xpose.msra.mxu0 %v830
    %1310 = vmatpush.xpose.msra.mxu0 %v827
    %1311 = vmatpush.xpose.msra.mxu0 %v824
    %1312 = vmatpush.xpose.msra.mxu0 %v821
    %1313 = vmatpush.xpose.msra.mxu0 %v818
    %1314 = vmatpush.xpose.msra.mxu0 %v815
    %1315 = vmatpush.xpose.msra.mxu0 %v812
    %1316 = vmatpush.xpose.msra.mxu0 %v809
    %1317 = vmatmul.f32.gmra.mxu0 %v275
    %v1318 = vpop.f32.mrf.mxu0
    %v1319 = vadd.f32 0.0, %v1318
    %1320 = vmatmul.f32.gmra.mxu0 %v278
    %v1321 = vpop.f32.mrf.mxu0
    %v1322 = vadd.f32 0.0, %v1321
    %1323 = vdwg.mxu0
    %1324 = vmatpush.xpose.msra.mxu0 %v902
    %1325 = vmatpush.xpose.msra.mxu0 %v899
    %1326 = vmatpush.xpose.msra.mxu0 %v896
    %1327 = vmatpush.xpose.msra.mxu0 %v893
    %1328 = vmatpush.xpose.msra.mxu0 %v890
    %1329 = vmatpush.xpose.msra.mxu0 %v887
    %1330 = vmatpush.xpose.msra.mxu0 %v884
    %1331 = vmatpush.xpose.msra.mxu0 %v881
    %1332 = vmatpush.xpose.msra.mxu0 %v878
    %1333 = vmatpush.xpose.msra.mxu0 %v875
    %1334 = vmatpush.xpose.msra.mxu0 %v872
    %1335 = vmatpush.xpose.msra.mxu0 %v869
    %1336 = vmatpush.xpose.msra.mxu0 %v866
    %1337 = vmatpush.xpose.msra.mxu0 %v863
    %1338 = vmatpush.xpose.msra.mxu0 %v860
    %1339 = vmatpush.xpose.msra.mxu0 %v857
    %1340 = vmatmul.f32.gmra.mxu0 %v275
    %v1341 = vpop.f32.mrf.mxu0
    %v1342 = vadd.f32 0.0, %v1341
    %1343 = vmatmul.f32.gmra.mxu0 %v278
    %v1344 = vpop.f32.mrf.mxu0
    %v1345 = vadd.f32 0.0, %v1344
    %1346 = vdwg.mxu0
    %1347 = vmatpush.xpose.msra.mxu0 %v950
    %1348 = vmatpush.xpose.msra.mxu0 %v947
    %1349 = vmatpush.xpose.msra.mxu0 %v944
    %1350 = vmatpush.xpose.msra.mxu0 %v941
    %1351 = vmatpush.xpose.msra.mxu0 %v938
    %1352 = vmatpush.xpose.msra.mxu0 %v935
    %1353 = vmatpush.xpose.msra.mxu0 %v932
    %1354 = vmatpush.xpose.msra.mxu0 %v929
    %1355 = vmatpush.xpose.msra.mxu0 %v926
    %1356 = vmatpush.xpose.msra.mxu0 %v923
    %1357 = vmatpush.xpose.msra.mxu0 %v920
    %1358 = vmatpush.xpose.msra.mxu0 %v917
    %1359 = vmatpush.xpose.msra.mxu0 %v914
    %1360 = vmatpush.xpose.msra.mxu0 %v911
    %1361 = vmatpush.xpose.msra.mxu0 %v908
    %1362 = vmatpush.xpose.msra.mxu0 %v905
    %1363 = vmatmul.f32.gmra.mxu0 %v275
    %v1364 = vpop.f32.mrf.mxu0
    %v1365 = vadd.f32 0.0, %v1364
    %1366 = vmatmul.f32.gmra.mxu0 %v278
    %v1367 = vpop.f32.mrf.mxu0
    %v1368 = vadd.f32 0.0, %v1367
    %1369 = vdwg.mxu0
    %1370 = vmatpush.xpose.msra.mxu0 %v998
    %1371 = vmatpush.xpose.msra.mxu0 %v995
    %1372 = vmatpush.xpose.msra.mxu0 %v992
    %1373 = vmatpush.xpose.msra.mxu0 %v989
    %1374 = vmatpush.xpose.msra.mxu0 %v986
    %1375 = vmatpush.xpose.msra.mxu0 %v983
    %1376 = vmatpush.xpose.msra.mxu0 %v980
    %1377 = vmatpush.xpose.msra.mxu0 %v977
    %1378 = vmatpush.xpose.msra.mxu0 %v974
    %1379 = vmatpush.xpose.msra.mxu0 %v971
    %1380 = vmatpush.xpose.msra.mxu0 %v968
    %1381 = vmatpush.xpose.msra.mxu0 %v965
    %1382 = vmatpush.xpose.msra.mxu0 %v962
    %1383 = vmatpush.xpose.msra.mxu0 %v959
    %1384 = vmatpush.xpose.msra.mxu0 %v956
    %1385 = vmatpush.xpose.msra.mxu0 %v953
    %1386 = vmatmul.f32.gmra.mxu0 %v275
    %v1387 = vpop.f32.mrf.mxu0
    %v1388 = vadd.f32 0.0, %v1387
    %1389 = vmatmul.f32.gmra.mxu0 %v278
    %v1390 = vpop.f32.mrf.mxu0
    %v1391 = vadd.f32 0.0, %v1390
    %1392 = vdwg.mxu0
    %1393 = vmatpush.xpose.msra.mxu0 %v1046
    %1394 = vmatpush.xpose.msra.mxu0 %v1043
    %1395 = vmatpush.xpose.msra.mxu0 %v1040
    %1396 = vmatpush.xpose.msra.mxu0 %v1037
    %1397 = vmatpush.xpose.msra.mxu0 %v1034
    %1398 = vmatpush.xpose.msra.mxu0 %v1031
    %1399 = vmatpush.xpose.msra.mxu0 %v1028
    %1400 = vmatpush.xpose.msra.mxu0 %v1025
    %1401 = vmatpush.xpose.msra.mxu0 %v1022
    %1402 = vmatpush.xpose.msra.mxu0 %v1019
    %1403 = vmatpush.xpose.msra.mxu0 %v1016
    %1404 = vmatpush.xpose.msra.mxu0 %v1013
    %1405 = vmatpush.xpose.msra.mxu0 %v1010
    %1406 = vmatpush.xpose.msra.mxu0 %v1007
    %1407 = vmatpush.xpose.msra.mxu0 %v1004
    %1408 = vmatpush.xpose.msra.mxu0 %v1001
    %1409 = vmatmul.f32.gmra.mxu0 %v275
    %v1410 = vpop.f32.mrf.mxu0
    %v1411 = vadd.f32 0.0, %v1410
    %1412 = vmatmul.f32.gmra.mxu0 %v278
    %v1413 = vpop.f32.mrf.mxu0
    %v1414 = vadd.f32 0.0, %v1413
    %1415 = vdwg.mxu0
    %1416 = vst [vmem:[#allocation4] sm:$0xff] %v1066
    %1417 = vst [vmem:[#allocation4 + $0x8] sm:$0xff] %v1089
    %1418 = vst [vmem:[#allocation4 + $0x10] sm:$0xff] %v1112
    %1419 = vst [vmem:[#allocation4 + $0x18] sm:$0xff] %v1135
    %1420 = vst [vmem:[#allocation4 + $0x20] sm:$0xff] %v1158
    %1421 = vst [vmem:[#allocation4 + $0x28] sm:$0xff] %v1181
    %1422 = vst [vmem:[#allocation4 + $0x30] sm:$0xff] %v1204
    %1423 = vst [vmem:[#allocation4 + $0x38] sm:$0xff] %v1227
    %1424 = vst [vmem:[#allocation4 + $0x40] sm:$0xff] %v1250
    %1425 = vst [vmem:[#allocation4 + $0x48] sm:$0xff] %v1273
    %1426 = vst [vmem:[#allocation4 + $0x50] sm:$0xff] %v1296
    %1427 = vst [vmem:[#allocation4 + $0x58] sm:$0xff] %v1319
    %1428 = vst [vmem:[#allocation4 + $0x60] sm:$0xff] %v1342
    %1429 = vst [vmem:[#allocation4 + $0x68] sm:$0xff] %v1365
    %1430 = vst [vmem:[#allocation4 + $0x70] sm:$0xff] %v1388
    %1431 = vst [vmem:[#allocation4 + $0x78] sm:$0xff] %v1411
    %1432 = vst [vmem:[#allocation2] sm:$0xff] %v1069
    %1433 = vst [vmem:[#allocation2 + $0x8] sm:$0xff] %v1092
    %1434 = vst [vmem:[#allocation2 + $0x10] sm:$0xff] %v1115
    %1435 = vst [vmem:[#allocation2 + $0x18] sm:$0xff] %v1138
    %1436 = vst [vmem:[#allocation2 + $0x20] sm:$0xff] %v1161
    %1437 = vst [vmem:[#allocation2 + $0x28] sm:$0xff] %v1184
    %1438 = vst [vmem:[#allocation2 + $0x30] sm:$0xff] %v1207
    %1439 = vst [vmem:[#allocation2 + $0x38] sm:$0xff] %v1230
    %1440 = vst [vmem:[#allocation2 + $0x40] sm:$0xff] %v1253
    %1441 = vst [vmem:[#allocation2 + $0x48] sm:$0xff] %v1276
    %1442 = vst [vmem:[#allocation2 + $0x50] sm:$0xff] %v1299
    %1443 = vst [vmem:[#allocation2 + $0x58] sm:$0xff] %v1322
    %1444 = vst [vmem:[#allocation2 + $0x60] sm:$0xff] %v1345
    %1445 = vst [vmem:[#allocation2 + $0x68] sm:$0xff] %v1368
    %1446 = vst [vmem:[#allocation2 + $0x70] sm:$0xff] %v1391
    %1447 = vst [vmem:[#allocation2 + $0x78] sm:$0xff] %v1414
    // Predicated region
    $region10: #{tpu_custom_call.1} parent=1 // pred_check
      _
    $region11: #{tpu_custom_call.1} parent=1 // pred_check_branch
      %1449 = sbr.rel (0) target = $region13
    $region12: #{tpu_custom_call.1} parent=1 // pred_region
      %1451 = vsyncadd [#allocation3], 0
      %s1453 = sshll.u32 [#allocation2], 4
      %s1454 = int_to_ptr.vmem [resolvable:$true] %s1453
      %s1455 = sshll.u32 %s2, 4
      %s1456 = int_to_ptr.hbm [resolvable:$true] %s1455
      %1458 = dma.vmem_to_hbm [thread:$0]  %s1454, 2048, %s1456, [#allocation3]
    $region13: #{tpu_custom_call.1} parent=1 // pred_fallthru
      _
    // Predicated region
    $region14: #{tpu_custom_call.1} parent=1 // pred_check
      _
    $region15: #{tpu_custom_call.1} parent=1 // pred_check_branch
      %1460 = sbr.rel (0) target = $region17
    $region16: #{tpu_custom_call.1} parent=1 // pred_region
      %1462 = vsyncadd [#allocation5], 0
      %s1464 = sshll.u32 [#allocation4], 4
      %s1465 = int_to_ptr.vmem [resolvable:$true] %s1464
      %s1466 = sshll.u32 %s3, 4
      %s1467 = int_to_ptr.hbm [resolvable:$true] %s1466
      %1469 = dma.vmem_to_hbm [thread:$0]  %s1465, 2048, %s1467, [#allocation5]
    $region17: #{tpu_custom_call.1} parent=1 // pred_fallthru
      _
    // Predicated region
    $region18: #{tpu_custom_call.1} parent=1 // pred_check
      _
    $region19: #{tpu_custom_call.1} parent=1 // pred_check_branch
      %1471 = sbr.rel (0) target = $region21
    $region20: #{tpu_custom_call.1} parent=1 // pred_region
      %1473 = dma.done [#allocation3], 2048
    $region21: #{tpu_custom_call.1} parent=1 // pred_fallthru
      _
    // Predicated region
    $region22: #{tpu_custom_call.1} parent=1 // pred_check
      _
    $region23: #{tpu_custom_call.1} parent=1 // pred_check_branch
      %1475 = sbr.rel (0) target = $region25
    $region24: #{tpu_custom_call.1} parent=1 // pred_region
      %1477 = dma.done [#allocation5], 2048
    $region25: #{tpu_custom_call.1} parent=1 // pred_fallthru
      _
    %1478 = vsyncpa [#allocation3], 1
    %1479 = vsyncpa [#allocation5], 1

</llo_original>
